<compile_context>
chip_gen: v7x
topology: tpu7x:2x2x1
jax: 0.10.0
libtpu: 0.0.40
codegen_flags: <defaults>
</compile_context>

<pallas_src>
import math

import jax
import jax.numpy as jnp
from jax import lax
from jax.experimental import pallas as pl
from jax.experimental.pallas import tpu as pltpu

_INV_SQRT2 = 0.7071067811865476  # 1 / sqrt(2)
_MIB = 1024 * 1024


def _cdiv(a, b):
    return -(-a // b)


def _round_up(x, m):
    return _cdiv(x, m) * m


def _balanced_tile(dim, target, align):
    """Multiple of `align` that splits `dim` into cdiv(dim, target) nearly equal
    blocks, so padding waste in the (masked) last block is < `align`."""
    nb = _cdiv(dim, target)
    return _round_up(_cdiv(dim, nb), align)


def _gelu_f32(y):
    # exact erf GELU: y * 0.5 * (1 + erf(y / sqrt(2))) with the divide replaced by
    # a multiply and the 0.5 folded into a single fused scale.
    # TODO(synk): if profiling shows the erf polynomial saturating the VPU after the
    # bf16 matmul speedup (v6e/v7x), consider bf16 GELU math or tanh-GELU (EUP slot).
    return y * (0.5 * lax.erf(y * jnp.float32(_INV_SQRT2)) + 0.5)


def _make_resident_kernel(tn):
    """W is fully VMEM-resident (constant index map); slice its j-th column tile."""
    def kernel(x_ref, w_ref, b_ref, o_ref):
        # x_ref: (tm, H) bf16, w_ref: (H, I) bf16, b_ref: (1, tn) f32, o_ref: (tm, tn)
        j = pl.program_id(1)
        col = pl.multiple_of(j * tn, 128)
        y = jnp.dot(x_ref[...], w_ref[:, pl.ds(col, tn)],
                    preferred_element_type=jnp.float32)
        y = y + b_ref[...]
        o_ref[...] = _gelu_f32(y).astype(o_ref.dtype)
    return kernel


def _streamed_kernel(x_ref, w_ref, b_ref, o_ref):
    # x_ref: (tm, H) bf16, w_ref: (H, tn) bf16, b_ref: (1, tn) f32, o_ref: (tm, tn)
    y = jnp.dot(x_ref[...], w_ref[...], preferred_element_type=jnp.float32)
    y = y + b_ref[...]
    o_ref[...] = _gelu_f32(y).astype(o_ref.dtype)


def m3bert_intermediate(hidden_states, weight, bias, *,
                        matmul_dtype=jnp.bfloat16,
                        tm_target=512, tn_target=2048,
                        resident_weight=None):
    """y = gelu(hidden_states @ weight + bias).

    hidden_states: (B, S, H); weight: (H, I); bias: (I,). Returns (B, S, I).
    matmul_dtype=jnp.float32 restores bit-exact module numerics (slower MXU path).
    """
    B, S, H = hidden_states.shape
    Hw, I = weight.shape
    assert Hw == H and bias.shape == (I,)
    M = B * S
    out_dtype = hidden_states.dtype
    in_isz = jnp.dtype(matmul_dtype).itemsize
    out_isz = jnp.dtype(out_dtype).itemsize

    # ---- tile selection ------------------------------------------------------
    tm = _balanced_tile(M, tm_target, 16)     # sublane-16 aligned (bf16 packing)
    tn = _balanced_tile(I, tn_target, 128)    # lane-dense output stores

    # Keep the whole weight VMEM-resident when small enough (BERT-base ~4.5 MiB,
    # BERT-large ~8 MiB in bf16).  I % 128 == 0 guarantees the in-kernel column
    # slice never reads out of bounds (tn then divides I by construction).
    if resident_weight is None:
        resident_weight = (I % 128 == 0) and (2 * H * I * in_isz <= 24 * _MIB)

    def plan_bytes(tm_, tn_):
        w = 2 * H * I * in_isz if resident_weight else 2 * H * tn_ * in_isz
        return w + 2 * tm_ * H * in_isz + 2 * tm_ * tn_ * out_isz + 2 * tn_ * 4

    # Double-buffered plan must fit comfortably on v7x (64 MiB physical VMEM).
    budget = 36 * _MIB
    while plan_bytes(tm, tn) > budget and tn > 128:
        tn = _balanced_tile(I, max(128, tn // 2), 128)
    while plan_bytes(tm, tn) > budget and tm > 16:
        tm = _balanced_tile(M, max(16, tm // 2), 16)

    grid_i = _cdiv(M, tm)
    grid_j = _cdiv(I, tn)

    # ---- operands (no jnp.pad / output slice: cdiv grids mask edge blocks) ----
    # TODO(synk): in a real module cast the weight to bf16 once at init, not per call;
    # activations are usually already bf16 in mixed-precision training/inference.
    x2d = hidden_states.reshape(M, H).astype(matmul_dtype)
    w2d = weight.astype(matmul_dtype)
    b2d = bias.astype(jnp.float32).reshape(1, I)

    if resident_weight:
        kernel = _make_resident_kernel(tn)
        grid = (grid_i, grid_j)
        in_specs = [
            pl.BlockSpec((tm, H), lambda i, j: (i, 0)),   # row tile, constant over j
            pl.BlockSpec((H, I), lambda i, j: (0, 0)),    # full weight, fetched once
            pl.BlockSpec((1, tn), lambda i, j: (0, j)),   # bias column tile
        ]
        out_specs = pl.BlockSpec((tm, tn), lambda i, j: (i, j))
    else:
        kernel = _streamed_kernel
        # j (intermediate dim) outermost: each weight column tile is fetched exactly
        # once; only the smaller (tm, H) activation tile is re-streamed per j.
        grid = (grid_j, grid_i)
        in_specs = [
            pl.BlockSpec((tm, H), lambda j, i: (i, 0)),
            pl.BlockSpec((H, tn), lambda j, i: (0, j)),
            pl.BlockSpec((1, tn), lambda j, i: (0, j)),
        ]
        out_specs = pl.BlockSpec((tm, tn), lambda j, i: (i, j))

    x_passes = 1 if resident_weight else grid_j
    cost = pl.CostEstimate(
        flops=2 * M * I * H,
        transcendentals=M * I,
        bytes_accessed=(x_passes * M * H * in_isz
                        + H * I * in_isz
                        + I * 4
                        + M * I * out_isz),
    )

    out = pl.pallas_call(
        kernel,
        out_shape=jax.ShapeDtypeStruct((M, I), out_dtype),
        grid_spec=pltpu.PrefetchScalarGridSpec(
            num_scalar_prefetch=0,
            grid=grid,
            in_specs=in_specs,
            out_specs=out_specs,
        ),
        compiler_params=pltpu.CompilerParams(
            dimension_semantics=("parallel", "parallel"),
            # Plan is kept <= ~36 MiB above; 48 MiB limit is safe on v7x (64 MiB)
            # and well above v5e's 16 MiB default scoped limit.
            vmem_limit_bytes=48 * _MIB,
        ),
        cost_estimate=cost,
    )(x2d, w2d, b2d)

    return out.reshape(B, S, I)


def reference(hidden_states, weight, bias):
    y = jnp.einsum("bsh,hi->bsi", hidden_states, weight) + bias
    return y * 0.5 * (1.0 + lax.erf(y / jnp.float32(math.sqrt(2.0))))


if __name__ == "__main__":
    # config: hidden_size=32, intermediate_size=128, hidden_act="gelu"
    batch, seq, hidden, inter = 2, 8, 32, 128

    key = jax.random.PRNGKey(0)
    kx, kw, kb = jax.random.split(key, 3)
    x = jax.random.normal(kx, (batch, seq, hidden), dtype=jnp.float32)
    # deterministic Linear params (PyTorch weight is (out,in); stored transposed here)
    w = jax.random.normal(kw, (hidden, inter), dtype=jnp.float32) * 0.02
    b = jax.random.normal(kb, (inter,), dtype=jnp.float32) * 0.02

    ref = reference(x, w, b)

    # default path: bf16 MXU inputs, resident weight -> relaxed tolerance vs f32 ref
    out = jax.block_until_ready(m3bert_intermediate(x, w, b))
    assert out.shape == (batch, seq, inter)
    assert out.dtype == x.dtype
    assert jnp.allclose(out, ref, atol=2e-2, rtol=2e-2)

    # streamed-weight path (exercised for coverage), still bf16
    out_s = jax.block_until_ready(m3bert_intermediate(x, w, b, resident_weight=False))
    assert jnp.allclose(out_s, ref, atol=2e-2, rtol=2e-2)

    # exact-numerics path (f32 matmul) matches the module bit-for-bit tolerance
    out_f32 = jax.block_until_ready(
        m3bert_intermediate(x, w, b, matmul_dtype=jnp.float32))
    assert jnp.allclose(out_f32, ref, atol=1e-5, rtol=1e-5)

    print("KERNEL_OK")
</pallas_src>

<mosaic_0001>
module attributes {stable_mosaic.version = 11 : i64} {
  func.func @kernel(%arg0: i32, %arg1: i32, %arg2: memref<16x32xbf16, #tpu.memory_space<vmem>>, %arg3: memref<32x128xbf16, #tpu.memory_space<vmem>>, %arg4: memref<1x128xf32, #tpu.memory_space<vmem>>, %arg5: memref<16x128xf32, #tpu.memory_space<vmem>>) attributes {dimension_semantics = [#tpu.dimension_semantics<parallel>, #tpu.dimension_semantics<parallel>], iteration_bounds = array<i64: 1, 1>, scalar_prefetch = 0 : i64, scratch_operands = 0 : i64, tpu.core_type = #tpu.core_type<tc>, window_params = [{transform_indices = @transform_0, window_bounds = array<i64: 16, 32>}, {pipeline_mode = #tpu.pipeline_mode<synchronous>, transform_indices = @transform_1, window_bounds = array<i64: 32, 128>}, {transform_indices = @transform_2, window_bounds = array<i64: 1, 128>}, {transform_indices = @transform_3, window_bounds = array<i64: 16, 128>}]} {
    %c128_i32 = arith.constant 128 : i32
    %0 = arith.muli %arg1, %c128_i32 : i32
    %1 = tpu.assume_multiple %0, 128 : i32
    %c0 = arith.constant 0 : index
    %c0_0 = arith.constant 0 : index
    %2 = vector.load %arg2[%c0, %c0_0] : memref<16x32xbf16, #tpu.memory_space<vmem>>, vector<16x32xbf16>
    %c0_1 = arith.constant 0 : index
    %3 = arith.index_cast %1 : i32 to index
    %4 = vector.load %arg3[%c0_1, %3] : memref<32x128xbf16, #tpu.memory_space<vmem>>, vector<32x128xbf16>
    %cst = arith.constant dense<0.000000e+00> : vector<16x128xf32>
    %5 = tpu.matmul %2, %4, %cst {dimension_numbers = #tpu.dot_dimension_numbers<[1], [0], [0], [1], [0, 0, 1, 1], [], []>} : vector<16x32xbf16>, vector<32x128xbf16>, vector<16x128xf32> -> vector<16x128xf32>
    %c0_2 = arith.constant 0 : index
    %c0_3 = arith.constant 0 : index
    %6 = vector.load %arg4[%c0_2, %c0_3] : memref<1x128xf32, #tpu.memory_space<vmem>>, vector<1x128xf32>
    %7 = vector.broadcast %6 : vector<1x128xf32> to vector<16x128xf32>
    %8 = arith.addf %5, %7 : vector<16x128xf32>
    %cst_4 = arith.constant 0.707106769 : f32
    %9 = vector.broadcast %cst_4 : f32 to vector<16x128xf32>
    %10 = arith.mulf %8, %9 : vector<16x128xf32>
    %11 = math.erf %10 : vector<16x128xf32>
    %cst_5 = arith.constant 5.000000e-01 : f32
    %12 = vector.broadcast %cst_5 : f32 to vector<16x128xf32>
    %13 = arith.mulf %12, %11 : vector<16x128xf32>
    %cst_6 = arith.constant 5.000000e-01 : f32
    %14 = vector.broadcast %cst_6 : f32 to vector<16x128xf32>
    %15 = arith.addf %13, %14 : vector<16x128xf32>
    %16 = arith.mulf %8, %15 : vector<16x128xf32>
    %c0_7 = arith.constant 0 : index
    %c0_8 = arith.constant 0 : index
    %17 = vector.load %arg5[%c0_7, %c0_8] : memref<16x128xf32, #tpu.memory_space<vmem>>, vector<16x128xf32>
    tpu.vector_store %arg5[%c0_7, %c0_8], %16 {strides = array<i32>} : memref<16x128xf32, #tpu.memory_space<vmem>>, vector<16x128xf32>,
    return
  }
  func.func @transform_0(%arg0: i32, %arg1: i32) -> (i32, i32) {
    %c0_i32 = arith.constant 0 : i32
    %c0_i32_0 = arith.constant 0 : i32
    return %arg0, %c0_i32 : i32, i32
  }
  func.func @transform_1(%arg0: i32, %arg1: i32) -> (i32, i32) {
    %c0_i32 = arith.constant 0 : i32
    %c0_i32_0 = arith.constant 0 : i32
    %c0_i32_1 = arith.constant 0 : i32
    return %c0_i32, %c0_i32_0 : i32, i32
  }
  func.func @transform_2(%arg0: i32, %arg1: i32) -> (i32, i32) {
    %c0_i32 = arith.constant 0 : i32
    %c0_i32_0 = arith.constant 0 : i32
    return %c0_i32, %arg1 : i32, i32
  }
  func.func @transform_3(%arg0: i32, %arg1: i32) -> (i32, i32) {
    %c0_i32 = arith.constant 0 : i32
    return %arg0, %arg1 : i32, i32
  }
}

</mosaic_0001>

<llo_original>
// kernel: tpu_custom_call.1
$region0: #{tpu_custom_call.1}
  #allocation0 [shape = 'u32[]', space=smem, size = 0x4, offset = 0x4, fixed_abs, tag = 'smem constant byte address 0x4 - core index']
  #allocation1 [shape = 'u32[144,128]{1,0:T(1,128)}', space=vmem, size = 0x12000, scoped, tag = 'internal scratch']
  %s0 = inlined_call_operand.hbm [shape: bf16[16,32], index: 0, kind: input, shape index: {}]
  %s1 = inlined_call_operand.hbm [shape: bf16[32,128], index: 1, kind: input, shape index: {}]
  %s2 = inlined_call_operand.vmem [shape: f32[1,128], index: 2, kind: input, shape index: {}]
  %s3 = inlined_call_operand.hbm [shape: f32[16,128], index: 3, kind: output, shape index: {}]
  %s4 = sld [smem:[#allocation0]]
  $region30: #{tpu_custom_call.1} parent=0
    _
  %s6 = ssub.s32 1, %s4
  %s7 = scalar_select 0, %s6, %s4
  $region1: #{tpu_custom_call.1} parent=0
    #allocation2 [shape = 'u8[4096]{0}', space=vmem, size = 0x1000, scoped, tag = 'input window, operand 0, single buffered']
    #allocation3 [shape = 's32[1]{0}', space=sflag, size = 0x4, scoped, tag = 'scoped memory for tpu_custom_call.1']
    #allocation4 [shape = 's32[1]{0}', space=sflag, size = 0x4, scoped, tag = 'scoped memory for tpu_custom_call.1']
    #allocation5 [shape = 'u8[8192]{0}', space=vmem, size = 0x2000, scoped, tag = 'input window, operand 1, single buffered']
    #allocation6 [shape = 's32[1]{0}', space=sflag, size = 0x4, scoped, tag = 'scoped memory for tpu_custom_call.1']
    #allocation7 [shape = 'u8[8192]{0}', space=vmem, size = 0x2000, scoped, tag = 'output window, operand 0, single buffered']
    %8 = vsyncpa [#allocation3], 0
    %9 = vsyncpa [#allocation6], 0
    %10 = vsyncpa [#allocation4], 0
    // Predicated region
    $region2: #{tpu_custom_call.1} parent=1 // pred_check
      _
    $region3: #{tpu_custom_call.1} parent=1 // pred_check_branch
      %12 = sbr.rel (0) target = $region5
    $region4: #{tpu_custom_call.1} parent=1 // pred_region
      %s14 = ssub.s32 128, 128
      %15 = vsyncadd [#allocation3], %s14
      %s16 = sshll.u32 [#allocation2], 4
      %s17 = int_to_ptr.vmem [resolvable:$true] %s16
      %22 = dma.hbm_to_vmem [thread:$0]  %s0, 128, %s17, [#allocation3], 64, 64, 4
    $region5: #{tpu_custom_call.1} parent=1 // pred_fallthru
      _
    // Predicated region
    $region6: #{tpu_custom_call.1} parent=1 // pred_check
      _
    $region7: #{tpu_custom_call.1} parent=1 // pred_check_branch
      %24 = sbr.rel (0) target = $region9
    $region8: #{tpu_custom_call.1} parent=1 // pred_region
      %s26 = ssub.s32 256, 256
      %27 = vsyncadd [#allocation6], %s26
      %s28 = sshll.u32 [#allocation5], 4
      %s29 = int_to_ptr.vmem [resolvable:$true] %s28
      %34 = dma.hbm_to_vmem [thread:$0]  %s1, 256, %s29, [#allocation6], 64, 64, 4
    $region9: #{tpu_custom_call.1} parent=1 // pred_fallthru
      _
    // Predicated region
    $region10: #{tpu_custom_call.1} parent=1 // pred_check
      _
    $region11: #{tpu_custom_call.1} parent=1 // pred_check_branch
      %36 = sbr.rel (0) target = $region13
    $region12: #{tpu_custom_call.1} parent=1 // pred_region
      _
    $region13: #{tpu_custom_call.1} parent=1 // pred_fallthru
      _
    // Predicated region
    $region14: #{tpu_custom_call.1} parent=1 // pred_check
      _
    $region15: #{tpu_custom_call.1} parent=1 // pred_check_branch
      %38 = sbr.rel (0) target = $region17
    $region16: #{tpu_custom_call.1} parent=1 // pred_region
      %39 = dma.done [#allocation3], 128
    $region17: #{tpu_custom_call.1} parent=1 // pred_fallthru
      _
    // Predicated region
    $region18: #{tpu_custom_call.1} parent=1 // pred_check
      _
    $region19: #{tpu_custom_call.1} parent=1 // pred_check_branch
      %41 = sbr.rel (0) target = $region21
    $region20: #{tpu_custom_call.1} parent=1 // pred_region
      %42 = dma.done [#allocation6], 256
    $region21: #{tpu_custom_call.1} parent=1 // pred_fallthru
      _
    %s44 = smul.u32 0, 128
    %v45 = vld [vmem:[#allocation2] sm:$0xf]
    %v46 = vld [vmem:[#allocation2 + $0x4] sm:$0xf]
    %s47 = sshra.s32 %s44, 7
    %s48 = sand.u32 %s44, 127
    %s49 = smul.addr %s47, 4
    %s50 = scalar_lea.vmem [#allocation5], %s49
    %v51 = vld [vmem:[%s50] sm:$0xf]
    %v52 = vld [vmem:[%s50 + $0x4] sm:$0xf]
    %v53 = vld [vmem:[%s50 + $0x8] sm:$0xf]
    %v54 = vld [vmem:[%s50 + $0xc] sm:$0xf]
    %v55 = vld [vmem:[%s2] sm:$0x1]
    %v57 = vlaneseq
    %v58 = vshrl.u32 %v57, 7
    %v59 = vsub.s32 0, %v58
    %v60 = vrot.slane %v55, %v59
    %v64 = vunpack.c.l.b16 %v45
    %v65 = vunpack.c.l.b16 %v46
    %v66 = vpack.c.b16 %v65, %v64
    %v71 = vunpack.c.l.b16 %v51
    %v72 = vunpack.c.l.b16 %v52
    %v73 = vunpack.c.l.b16 %v53
    %v74 = vunpack.c.l.b16 %v54
    %v75 = vpack.c.b16 %v72, %v71
    %v76 = vpack.c.b16 %v74, %v73
    %vm79 = vcmask 261120
    %v81 = vsel %vm79, %v66, 0
    %83 = vmatprep.subr.bf16.mxu0 0
    %84 = vmatpush1.bf16.msra.mxu0 %v75
    %85 = vmatprep.subr.bf16.mxu0 0
    %86 = vmatpush1.bf16.msra.mxu0 %v76
    %87 = vmatprep.subr.bf16.mxu0 0
    %88 = vmatpush1.bf16.msra.mxu0 0
    %89 = vmatprep.subr.bf16.mxu0 0
    %90 = vmatpush1.bf16.msra.mxu0 0
    %91 = vmatprep.subr.bf16.mxu0 0
    %92 = vmatpush1.bf16.msra.mxu0 0
    %93 = vmatprep.subr.bf16.mxu0 0
    %94 = vmatpush1.bf16.msra.mxu0 0
    %95 = vmatprep.subr.bf16.mxu0 0
    %96 = vmatpush1.bf16.msra.mxu0 0
    %97 = vmatprep.subr.bf16.mxu0 0
    %98 = vmatpush1.bf16.msra.mxu0 0
    %99 = vmatprep.subr.bf16.mxu0 0
    %100 = vmatpush1.bf16.msra.mxu0 0
    %101 = vmatprep.subr.bf16.mxu0 0
    %102 = vmatpush1.bf16.msra.mxu0 0
    %103 = vmatprep.subr.bf16.mxu0 0
    %104 = vmatpush1.bf16.msra.mxu0 0
    %105 = vmatprep.subr.bf16.mxu0 0
    %106 = vmatpush1.bf16.msra.mxu0 0
    %107 = vmatprep.subr.bf16.mxu0 0
    %108 = vmatpush1.bf16.msra.mxu0 0
    %109 = vmatprep.subr.bf16.mxu0 0
    %110 = vmatpush1.bf16.msra.mxu0 0
    %111 = vmatprep.subr.bf16.mxu0 0
    %112 = vmatpush1.bf16.msra.mxu0 0
    %113 = vmatprep.subr.bf16.mxu0 0
    %114 = vmatpush1.bf16.msra.mxu0 0
    %115 = vmatprep.mubr.bf16.mxu0 0
    %116 = vmatmul.mubr.bf16.gmra.mrb[0].mxu0 %v81
    %v117 = vpop.f32.mrb[0].mxu0
    %v118 = vadd.f32 %v60, %v117
    %v119 = vpop.f32.mrb[0].mxu0
    %v120 = vpop.f32.mrb[0].mxu0
    %v121 = vadd.f32 %v60, %v120
    %v122 = vpop.f32.mrb[0].mxu0
    %123 = vdwg.mxu0
    %v124 = vmul.f32 %v118, 0.70710677
    %v125 = vmul.f32 %v121, 0.70710677
    %v126 = verf.f32.pop %v124
    %v127 = verf.f32.pop %v125
    %v128 = vmul.f32 %v126, 0.5
    %v129 = vmul.f32 %v127, 0.5
    %v130 = vadd.f32 %v128, 0.5
    %v131 = vadd.f32 %v129, 0.5
    %v132 = vmul.f32 %v118, %v130
    %v133 = vmul.f32 %v121, %v131
    %134 = vst [vmem:[#allocation7] sm:$0xff] %v132
    %135 = vst [vmem:[#allocation7 + $0x8] sm:$0xff] %v133
    // Predicated region
    $region22: #{tpu_custom_call.1} parent=1 // pred_check
      _
    $region23: #{tpu_custom_call.1} parent=1 // pred_check_branch
      %137 = sbr.rel (0) target = $region25
    $region24: #{tpu_custom_call.1} parent=1 // pred_region
      %s139 = ssub.s32 256, 256
      %140 = vsyncadd [#allocation4], %s139
      %s141 = sshll.u32 [#allocation7], 4
      %s142 = int_to_ptr.vmem [resolvable:$true] %s141
      %147 = dma.vmem_to_hbm [thread:$0]  %s142, 256, %s3, [#allocation4], 128, 128, 8
    $region25: #{tpu_custom_call.1} parent=1 // pred_fallthru
      _
    // Predicated region
    $region26: #{tpu_custom_call.1} parent=1 // pred_check
      _
    $region27: #{tpu_custom_call.1} parent=1 // pred_check_branch
      %149 = sbr.rel (0) target = $region29
    $region28: #{tpu_custom_call.1} parent=1 // pred_region
      %150 = dma.done [#allocation4], 256
    $region29: #{tpu_custom_call.1} parent=1 // pred_fallthru
      _
    %151 = vsyncpa [#allocation3], 1
    %152 = vsyncpa [#allocation6], 1
    %153 = vsyncpa [#allocation4], 1

</llo_original>
